<compile_context>
chip_gen: v5e
topology: v5e:2x2
jax: 0.10.0
libtpu: 0.0.40
codegen_flags: <defaults>
</compile_context>

<pallas_src>
import jax
import jax.numpy as jnp
from jax.experimental import pallas as pl
from jax.experimental.pallas import tpu as pltpu


def _attention_kernel(hid_ref, enc_ref, out_ref, acc_ref):
    # hid_ref: (tB, tD)   enc_ref: (S, tB, tD)   out_ref: (tB, S)
    # acc_ref: (tB, S) f32 energy accumulator (persists across the D axis)
    d = pl.program_id(1)
    nd = pl.num_programs(1)

    @pl.when(d == 0)
    def _init():
        acc_ref[...] = jnp.zeros_like(acc_ref)

    hid = hid_ref[...]                     # (tB, tD), native dtype (no full upcast)
    enc = enc_ref[...]                     # (S, tB, tD), native dtype
    prod = enc * hid[None, :, :]           # VPU elementwise
    # D-chunk reduction over the lane axis, accumulated in f32.
    partial = jnp.sum(prod, axis=-1, dtype=jnp.float32)   # (S, tB)
    # Small in-register transpose -> lane-dense (tB, S) energy tile.
    acc_ref[...] += partial.T

    @pl.when(d == nd - 1)
    def _finalize():
        energy = acc_ref[...]                                   # (tB, S), f32
        m = jnp.max(energy, axis=1, keepdims=True)
        e = jnp.exp(energy - m)
        denom = jnp.sum(e, axis=1, keepdims=True)
        inv = pl.reciprocal(denom, approx=True)                 # EUP, not VPU divide
        out_ref[...] = (e * inv).astype(out_ref.dtype)


def _pick_tiles(S, B, D, itemsize, budget_bytes=24 * 1024 * 1024):
    """Pick (tB, tD) so the double-buffered encoder block fits comfortably in
    VMEM on all generations (incl. v7x's 64 MiB physical)."""
    # Batch tile: full batch if small, otherwise a multiple of 8, capped at 512.
    tB = B if B <= 512 else 512
    while tB > 8 and 2 * S * tB * D * itemsize > budget_bytes:
        tB = max(8, (tB // 2) & ~7)

    # Reduction (D) tile: keep the full reduction resident when possible;
    # otherwise tile D with a divisor that is a multiple of 128 (no masking
    # needed in the kernel because padded D-chunks never occur).
    tD = D
    if 2 * S * tB * D * itemsize > budget_bytes:
        for k in range(2, max(2, D // 128) + 1):
            if D % k == 0 and (D // k) % 128 == 0 and \
               2 * S * tB * (D // k) * itemsize <= budget_bytes:
                tD = D // k
                break
    return tB, tD


def attention(hidden, encoder_outputs):
    """hidden: (B, D); encoder_outputs: (S, B, D) -> attention weights (B, S)."""
    S, B, D = encoder_outputs.shape
    assert hidden.shape == (B, D)
    out_dtype = jnp.result_type(hidden.dtype, encoder_outputs.dtype)

    itemsize = jnp.dtype(encoder_outputs.dtype).itemsize
    tB, tD = _pick_tiles(S, B, D, itemsize)
    grid = (pl.cdiv(B, tB), D // tD)

    return pl.pallas_call(
        _attention_kernel,
        out_shape=jax.ShapeDtypeStruct((B, S), out_dtype),
        grid_spec=pltpu.PrefetchScalarGridSpec(
            num_scalar_prefetch=0,
            grid=grid,
            in_specs=[
                # hidden: (B, D) tiled (tB, tD)
                pl.BlockSpec((tB, tD), lambda b, d: (b, d)),
                # encoder_outputs consumed seq-major: (S, B, D) tiled (S, tB, tD)
                pl.BlockSpec((S, tB, tD), lambda b, d: (0, b, d)),
            ],
            # Output block is revisited across the D (reduction) axis.
            out_specs=pl.BlockSpec((tB, S), lambda b, d: (b, 0)),
            scratch_shapes=[pltpu.VMEM((tB, S), jnp.float32)],
        ),
        compiler_params=pltpu.CompilerParams(
            dimension_semantics=("parallel", "arbitrary"),
            vmem_limit_bytes=48 * 1024 * 1024,
        ),
    )(hidden, encoder_outputs)


def attention_ref(hidden, encoder_outputs):
    """Pure-JAX reference mirroring the PyTorch forward exactly."""
    enc = jnp.transpose(encoder_outputs, (1, 0, 2))          # (B, S, D)
    energy = jnp.einsum("bsd,bd->bs", enc, hidden)           # bmm + squeeze
    return jax.nn.softmax(energy, axis=1)


if __name__ == "__main__":
    # The Attention module has no parameters (hid_dim is metadata only);
    # just build deterministic inputs consistent with the forward pass.
    batch, src_len, hid_dim = 2, 8, 32

    key = jax.random.PRNGKey(0)
    k_h, k_e = jax.random.split(key)
    hidden = jax.random.normal(k_h, (batch, hid_dim), dtype=jnp.float32)
    encoder_outputs = jax.random.normal(
        k_e, (src_len, batch, hid_dim), dtype=jnp.float32
    )

    out = attention(hidden, encoder_outputs)
    out = jax.block_until_ready(out)

    ref = attention_ref(hidden, encoder_outputs)
    assert out.shape == (batch, src_len)
    # Tolerance accounts for the EUP approximate reciprocal in the epilogue.
    assert jnp.allclose(out, ref, atol=2e-3, rtol=2e-3), "mismatch vs reference"
    assert jnp.allclose(jnp.sum(out, axis=1), 1.0, atol=2e-3), "rows must sum to 1"

    print("KERNEL_OK")
</pallas_src>

<mosaic_0001>
module attributes {stable_mosaic.version = 11 : i64} {
  func.func @_attention_kernel(%arg0: i32, %arg1: i32, %arg2: memref<2x32xf32, #tpu.memory_space<vmem>>, %arg3: memref<8x2x32xf32, #tpu.memory_space<vmem>>, %arg4: memref<2x8xf32, #tpu.memory_space<vmem>>, %arg5: memref<2x8xf32, #tpu.memory_space<vmem>>) attributes {dimension_semantics = [#tpu.dimension_semantics<parallel>, #tpu.dimension_semantics<arbitrary>], iteration_bounds = array<i64: 1, 1>, scalar_prefetch = 0 : i64, scratch_operands = 1 : i64, tpu.core_type = #tpu.core_type<tc>, window_params = [{transform_indices = @transform_0, window_bounds = array<i64: 2, 32>}, {transform_indices = @transform_1, window_bounds = array<i64: 8, 2, 32>}, {transform_indices = @transform_2, window_bounds = array<i64: 2, 8>}]} {
    %c0_i32 = arith.constant 0 : i32
    %0 = arith.cmpi eq, %arg1, %c0_i32 : i32
    %1 = arith.extui %0 : i1 to i32
    %c0_i32_0 = arith.constant 0 : i32
    %2 = arith.cmpi ne, %1, %c0_i32_0 : i32
    scf.if %2 {
      %cst_11 = arith.constant 0.000000e+00 : f32
      %16 = vector.broadcast %cst_11 : f32 to vector<2x8xf32>
      %c0_12 = arith.constant 0 : index
      %c0_13 = arith.constant 0 : index
      %17 = vector.load %arg5[%c0_12, %c0_13] : memref<2x8xf32, #tpu.memory_space<vmem>>, vector<2x8xf32>
      tpu.vector_store %arg5[%c0_12, %c0_13], %16 {strides = array<i32>} : memref<2x8xf32, #tpu.memory_space<vmem>>, vector<2x8xf32>,
    } else {
    }
    %c0 = arith.constant 0 : index
    %c0_1 = arith.constant 0 : index
    %3 = vector.load %arg2[%c0, %c0_1] : memref<2x32xf32, #tpu.memory_space<vmem>>, vector<2x32xf32>
    %c0_2 = arith.constant 0 : index
    %c0_3 = arith.constant 0 : index
    %c0_4 = arith.constant 0 : index
    %4 = vector.load %arg3[%c0_2, %c0_3, %c0_4] : memref<8x2x32xf32, #tpu.memory_space<vmem>>, vector<8x2x32xf32>
    %5 = vector.shape_cast %3 : vector<2x32xf32> to vector<1x2x32xf32>
    %6 = vector.broadcast %5 : vector<1x2x32xf32> to vector<8x2x32xf32>
    %7 = arith.mulf %4, %6 : vector<8x2x32xf32>
    %cst = arith.constant dense<0.000000e+00> : vector<8x2xf32>
    %8 = vector.multi_reduction <add>, %7, %cst [2] : vector<8x2x32xf32> to vector<8x2xf32>
    %c0_5 = arith.constant 0 : index
    %c0_6 = arith.constant 0 : index
    %9 = vector.load %arg5[%c0_5, %c0_6] : memref<2x8xf32, #tpu.memory_space<vmem>>, vector<2x8xf32>
    %10 = tpu.transpose %8, [1, 0] : vector<8x2xf32> -> vector<2x8xf32>
    %11 = arith.addf %9, %10 : vector<2x8xf32>
    %c0_7 = arith.constant 0 : index
    %c0_8 = arith.constant 0 : index
    %12 = vector.load %arg5[%c0_7, %c0_8] : memref<2x8xf32, #tpu.memory_space<vmem>>, vector<2x8xf32>
    tpu.vector_store %arg5[%c0_7, %c0_8], %11 {strides = array<i32>} : memref<2x8xf32, #tpu.memory_space<vmem>>, vector<2x8xf32>,
    %c0_i32_9 = arith.constant 0 : i32
    %13 = arith.cmpi eq, %arg1, %c0_i32_9 : i32
    %14 = arith.extui %13 : i1 to i32
    %c0_i32_10 = arith.constant 0 : i32
    %15 = arith.cmpi ne, %14, %c0_i32_10 : i32
    scf.if %15 {
      %c0_11 = arith.constant 0 : index
      %c0_12 = arith.constant 0 : index
      %16 = vector.load %arg5[%c0_11, %c0_12] : memref<2x8xf32, #tpu.memory_space<vmem>>, vector<2x8xf32>
      %cst_13 = arith.constant dense<0xFF800000> : vector<2xf32>
      %17 = vector.multi_reduction <maximumf>, %16, %cst_13 [1] : vector<2x8xf32> to vector<2xf32>
      %18 = vector.shape_cast %17 : vector<2xf32> to vector<2x1xf32>
      %19 = vector.broadcast %18 : vector<2x1xf32> to vector<2x8xf32>
      %20 = arith.subf %16, %19 : vector<2x8xf32>
      %21 = math.exp %20 : vector<2x8xf32>
      %cst_14 = arith.constant dense<0.000000e+00> : vector<2xf32>
      %22 = vector.multi_reduction <add>, %21, %cst_14 [1] : vector<2x8xf32> to vector<2xf32>
      %23 = vector.shape_cast %22 : vector<2xf32> to vector<2x1xf32>
      %24 = tpu.reciprocal %23 {approx = true} : vector<2x1xf32> -> vector<2x1xf32>
      %25 = vector.broadcast %24 : vector<2x1xf32> to vector<2x8xf32>
      %26 = arith.mulf %21, %25 : vector<2x8xf32>
      %c0_15 = arith.constant 0 : index
      %c0_16 = arith.constant 0 : index
      %27 = vector.load %arg4[%c0_15, %c0_16] : memref<2x8xf32, #tpu.memory_space<vmem>>, vector<2x8xf32>
      tpu.vector_store %arg4[%c0_15, %c0_16], %26 {strides = array<i32>} : memref<2x8xf32, #tpu.memory_space<vmem>>, vector<2x8xf32>,
    } else {
    }
    return
  }
  func.func @transform_0(%arg0: i32, %arg1: i32) -> (i32, i32) {
    %c0_i32 = arith.constant 0 : i32
    return %arg0, %arg1 : i32, i32
  }
  func.func @transform_1(%arg0: i32, %arg1: i32) -> (i32, i32, i32) {
    %c0_i32 = arith.constant 0 : i32
    %c0_i32_0 = arith.constant 0 : i32
    return %c0_i32, %arg0, %arg1 : i32, i32, i32
  }
  func.func @transform_2(%arg0: i32, %arg1: i32) -> (i32, i32) {
    %c0_i32 = arith.constant 0 : i32
    %c0_i32_0 = arith.constant 0 : i32
    return %arg0, %c0_i32 : i32, i32
  }
}

</mosaic_0001>

<llo_original>
// kernel: tpu_custom_call.1
$region0: #{tpu_custom_call.1}
  #allocation0 [shape = 'u32[]', space=smem, size = 0x4, offset = 0x4, fixed_abs, tag = 'smem constant byte address 0x4 - core index']
  #allocation1 [shape = 'u32[72,128]{1,0:T(1,128)}', space=vmem, size = 0x9000, scoped, tag = 'internal scratch']
  #allocation2 [shape = 'f32[2,8]{1,0:T(2,128)}', space=vmem, size = 0x400, scoped, tag = 'scratch operand']
  %s0 = inlined_call_operand.hbm [shape: f32[2,32], index: 0, kind: input, shape index: {}]
  %s1 = inlined_call_operand.hbm [shape: f32[8,2,32], index: 1, kind: input, shape index: {}]
  %s2 = inlined_call_operand.hbm [shape: f32[2,8], index: 2, kind: output, shape index: {}]
  %s3 = sld [smem:[#allocation0]]
  $region34: #{tpu_custom_call.1} parent=0
    _
  %s5 = ssub.s32 1, %s3
  %s6 = scalar_select 0, %s5, %s3
  $region1: #{tpu_custom_call.1} parent=0
    #allocation3 [shape = 'u8[1024]{0}', space=vmem, size = 0x400, scoped, tag = 'input window, operand 0, single buffered']
    #allocation4 [shape = 's32[1]{0}', space=sflag, size = 0x4, scoped, tag = 'scoped memory for tpu_custom_call.1']
    #allocation5 [shape = 's32[1]{0}', space=sflag, size = 0x4, scoped, tag = 'scoped memory for tpu_custom_call.1']
    #allocation6 [shape = 'u8[8192]{0}', space=vmem, size = 0x2000, scoped, tag = 'input window, operand 1, single buffered']
    #allocation7 [shape = 's32[1]{0}', space=sflag, size = 0x4, scoped, tag = 'scoped memory for tpu_custom_call.1']
    #allocation8 [shape = 'u8[1024]{0}', space=vmem, size = 0x400, scoped, tag = 'output window, operand 0, single buffered']
    %7 = vsyncpa [#allocation4], 0
    %8 = vsyncpa [#allocation7], 0
    %9 = vsyncpa [#allocation5], 0
    // Predicated region
    $region2: #{tpu_custom_call.1} parent=1 // pred_check
      _
    $region3: #{tpu_custom_call.1} parent=1 // pred_check_branch
      %11 = sbr.rel (0) target = $region5
    $region4: #{tpu_custom_call.1} parent=1 // pred_region
      %13 = vsyncadd [#allocation4], 0
      %s15 = sshll.u32 %s0, 4
      %s16 = int_to_ptr.hbm [resolvable:$true] %s15
      %s17 = sshll.u32 [#allocation3], 4
      %s18 = int_to_ptr.vmem [resolvable:$true] %s17
      %20 = dma.hbm_to_vmem [thread:$0]  %s16, 32, %s18, [#allocation4]
    $region5: #{tpu_custom_call.1} parent=1 // pred_fallthru
      _
    // Predicated region
    $region6: #{tpu_custom_call.1} parent=1 // pred_check
      _
    $region7: #{tpu_custom_call.1} parent=1 // pred_check_branch
      %22 = sbr.rel (0) target = $region9
    $region8: #{tpu_custom_call.1} parent=1 // pred_region
      %24 = vsyncadd [#allocation7], 0
      %s25 = sshll.u32 %s1, 4
      %s26 = int_to_ptr.hbm [resolvable:$true] %s25
      %s27 = sshll.u32 [#allocation6], 4
      %s28 = int_to_ptr.vmem [resolvable:$true] %s27
      %33 = dma.hbm_to_vmem [thread:$0]  %s26, 256, %s28, [#allocation7], 32, 32, 2
    $region9: #{tpu_custom_call.1} parent=1 // pred_fallthru
      _
    // Predicated region
    $region10: #{tpu_custom_call.1} parent=1 // pred_check
      _
    $region11: #{tpu_custom_call.1} parent=1 // pred_check_branch
      %35 = sbr.rel (0) target = $region13
    $region12: #{tpu_custom_call.1} parent=1 // pred_region
      %37 = dma.done [#allocation4], 32
    $region13: #{tpu_custom_call.1} parent=1 // pred_fallthru
      _
    // Predicated region
    $region14: #{tpu_custom_call.1} parent=1 // pred_check
      _
    $region15: #{tpu_custom_call.1} parent=1 // pred_check_branch
      %39 = sbr.rel (0) target = $region17
    $region16: #{tpu_custom_call.1} parent=1 // pred_region
      %41 = dma.done [#allocation7], 256
    $region17: #{tpu_custom_call.1} parent=1 // pred_fallthru
      _
    %p42 = scmp.eq.s32.totalorder 0, 0
    // Predicated region
    $region18: #{tpu_custom_call.1} parent=1 // pred_check
      %p43 = pneg %p42
    $region19: #{tpu_custom_call.1} parent=1 // pred_check_branch
      %45 = sbr.rel (%p43) target = $region21
    $region20: #{tpu_custom_call.1} parent=1 // pred_region
      %vm46 = vcmask 58368
      %47 = vst.msk [vmem:[#allocation2] sm:$0x3] %vm46, 0.0
    $region21: #{tpu_custom_call.1} parent=1 // pred_fallthru
      _
    %v48 = vld [vmem:[#allocation3] sm:$0x3]
    %v49 = vld [vmem:[#allocation6] sm:$0x3]
    %v50 = vld [vmem:[#allocation6 + $0x2] sm:$0x3]
    %v51 = vld [vmem:[#allocation6 + $0x4] sm:$0x3]
    %v52 = vld [vmem:[#allocation6 + $0x6] sm:$0x3]
    %v53 = vld [vmem:[#allocation6 + $0x8] sm:$0x3]
    %v54 = vld [vmem:[#allocation6 + $0xa] sm:$0x3]
    %v55 = vld [vmem:[#allocation6 + $0xc] sm:$0x3]
    %v56 = vld [vmem:[#allocation6 + $0xe] sm:$0x3]
    %v57 = vmul.f32 %v49, %v48
    %v58 = vmul.f32 %v50, %v48
    %v59 = vmul.f32 %v51, %v48
    %v60 = vmul.f32 %v52, %v48
    %v61 = vmul.f32 %v53, %v48
    %v62 = vmul.f32 %v54, %v48
    %v63 = vmul.f32 %v55, %v48
    %v64 = vmul.f32 %v56, %v48
    %vm65 = vcmask 254976
    %v66 = vsel %vm65, %v57, 0.0
    %67 = vadd.xlane.f32.xlu0 %v66
    %v68 = vpop.xlane.xlu0 %67
    %v69 = vsel %vm65, %v58, 0.0
    %70 = vadd.xlane.f32.xlu0 %v69
    %v71 = vpop.xlane.xlu0 %70
    %v72 = vsel %vm65, %v59, 0.0
    %73 = vadd.xlane.f32.xlu0 %v72
    %v74 = vpop.xlane.xlu0 %73
    %v75 = vsel %vm65, %v60, 0.0
    %76 = vadd.xlane.f32.xlu0 %v75
    %v77 = vpop.xlane.xlu0 %76
    %v78 = vsel %vm65, %v61, 0.0
    %79 = vadd.xlane.f32.xlu0 %v78
    %v80 = vpop.xlane.xlu0 %79
    %v81 = vsel %vm65, %v62, 0.0
    %82 = vadd.xlane.f32.xlu0 %v81
    %v83 = vpop.xlane.xlu0 %82
    %v84 = vsel %vm65, %v63, 0.0
    %85 = vadd.xlane.f32.xlu0 %v84
    %v86 = vpop.xlane.xlu0 %85
    %v87 = vsel %vm65, %v64, 0.0
    %88 = vadd.xlane.f32.xlu0 %v87
    %v89 = vpop.xlane.xlu0 %88
    %v90 = vld [vmem:[#allocation2] sm:$0x3]
    %v99 = vlaneseq
    %v100 = vand.u32 %v99, 127
    %v101 = vperm.slane %v68, %v100
    %v102 = vperm.slane %v71, %v100
    %v103 = vperm.slane %v74, %v100
    %v104 = vperm.slane %v77, %v100
    %v105 = vperm.slane %v80, %v100
    %v106 = vperm.slane %v83, %v100
    %v107 = vperm.slane %v86, %v100
    %v108 = vperm.slane %v89, %v100
    %vm109 = vcmask 1041409
    %v110 = vsel %vm109, %v102, %v101
    %vm111 = vcmask 1042434
    %v112 = vsel %vm111, %v103, %v110
    %vm113 = vcmask 1043459
    %v114 = vsel %vm113, %v104, %v112
    %vm115 = vcmask 1044484
    %v116 = vsel %vm115, %v105, %v114
    %vm117 = vcmask 1045509
    %v118 = vsel %vm117, %v106, %v116
    %vm119 = vcmask 1046534
    %v120 = vsel %vm119, %v107, %v118
    %vm121 = vcmask 1047559
    %v122 = vsel %vm121, %v108, %v120
    %124 = vxpose.xlu0.b32.start [1/16] %v122, 128
    %125 = vxpose.xlu0.b32.cont [2/16] 0.0, 128
    %126 = vxpose.xlu0.b32.cont [3/16] 0.0, 128
    %127 = vxpose.xlu0.b32.cont [4/16] 0.0, 128
    %128 = vxpose.xlu0.b32.cont [5/16] 0.0, 128
    %129 = vxpose.xlu0.b32.cont [6/16] 0.0, 128
    %130 = vxpose.xlu0.b32.cont [7/16] 0.0, 128
    %131 = vxpose.xlu0.b32.cont [8/16] 0.0, 128
    %132 = vxpose.xlu0.b32.cont [9/16] 0.0, 128
    %133 = vxpose.xlu0.b32.cont [10/16] 0.0, 128
    %134 = vxpose.xlu0.b32.cont [11/16] 0.0, 128
    %135 = vxpose.xlu0.b32.cont [12/16] 0.0, 128
    %136 = vxpose.xlu0.b32.cont [13/16] 0.0, 128
    %137 = vxpose.xlu0.b32.cont [14/16] 0.0, 128
    %138 = vxpose.xlu0.b32.cont [15/16] 0.0, 128
    %139 = vxpose.xlu0.b32.end [16/16] 0.0, 128
    %v140 = vpop.trf.xlu0
    %v141 = vpop.trf.xlu0
    %v142 = vpop.trf.xlu0
    %v143 = vpop.trf.xlu0
    %v144 = vpop.trf.xlu0
    %v145 = vpop.trf.xlu0
    %v146 = vpop.trf.xlu0
    %v147 = vpop.trf.xlu0
    %v148 = vpop.trf.xlu0
    %v149 = vpop.trf.xlu0
    %v150 = vpop.trf.xlu0
    %v151 = vpop.trf.xlu0
    %v152 = vpop.trf.xlu0
    %v153 = vpop.trf.xlu0
    %v154 = vpop.trf.xlu0
    %v155 = vpop.trf.xlu0
    %v156 = vadd.f32 %v90, %v140
    %vm157 = vcmask 58368
    %158 = vst.msk [vmem:[#allocation2] sm:$0x3] %vm157, %v156
    // Predicated region
    $region22: #{tpu_custom_call.1} parent=1 // pred_check
      %p159 = pneg %p42
    $region23: #{tpu_custom_call.1} parent=1 // pred_check_branch
      %161 = sbr.rel (%p159) target = $region25
    $region24: #{tpu_custom_call.1} parent=1 // pred_region
      %v162 = vld [vmem:[#allocation2] sm:$0x3]
      %v163 = vsel %vm157, %v162, -inf
      %164 = vmax.xlane.f32.xlu0 %v163
      %v165 = vpop.xlane.xlu0 %164
      %v166 = vsub.f32 %v162, %v165
      %v167 = vmul.f32 %v166, 1.442695
      %v168 = vpow.pop %v167
      %v169 = vsel %vm157, %v168, 0.0
      %170 = vadd.xlane.f32.xlu0 %v169
      %v171 = vpop.xlane.xlu0 %170
      %v172 = vrcp.pop %v171
      %v173 = vmul.f32 %v168, %v172
      %174 = vst.msk [vmem:[#allocation8] sm:$0x3] %vm157, %v173
    $region25: #{tpu_custom_call.1} parent=1 // pred_fallthru
      _
    // Predicated region
    $region26: #{tpu_custom_call.1} parent=1 // pred_check
      _
    $region27: #{tpu_custom_call.1} parent=1 // pred_check_branch
      %176 = sbr.rel (0) target = $region29
    $region28: #{tpu_custom_call.1} parent=1 // pred_region
      %178 = vsyncadd [#allocation5], 0
      %s180 = sshll.u32 [#allocation8], 4
      %s181 = int_to_ptr.vmem [resolvable:$true] %s180
      %s182 = sshll.u32 %s2, 4
      %s183 = int_to_ptr.hbm [resolvable:$true] %s182
      %185 = dma.vmem_to_hbm [thread:$0]  %s181, 32, %s183, [#allocation5]
    $region29: #{tpu_custom_call.1} parent=1 // pred_fallthru
      _
    // Predicated region
    $region30: #{tpu_custom_call.1} parent=1 // pred_check
      _
    $region31: #{tpu_custom_call.1} parent=1 // pred_check_branch
      %187 = sbr.rel (0) target = $region33
    $region32: #{tpu_custom_call.1} parent=1 // pred_region
      %189 = dma.done [#allocation5], 32
    $region33: #{tpu_custom_call.1} parent=1 // pred_fallthru
      _
    %190 = vsyncpa [#allocation4], 1
    %191 = vsyncpa [#allocation7], 1
    %192 = vsyncpa [#allocation5], 1

</llo_original>
